<compile_context>
chip_gen: v7x
topology: tpu7x:2x2x1
jax: 0.10.0
libtpu: 0.0.40
codegen_flags: <defaults>
</compile_context>

<pallas_src>
import math
import functools

import jax
import jax.numpy as jnp
from jax import lax
from jax.experimental import pallas as pl
from jax.experimental.pallas import tpu as pltpu


# ------------------------------------------------------------------
# Tiling helpers
# ------------------------------------------------------------------
def _sublane_align(dtype):
    # 8 sublanes for 4-byte dtypes, 16 for bf16, 32 for int8.
    return max(8, 32 // jnp.dtype(dtype).itemsize)


def _pick_tile(dim, target, align):
    """Largest multiple of `align` that divides `dim` and is <= target; else full dim.
    # TODO(synk): pad + mask instead of the full-dim fallback for awkward (prime-ish) dims.
    """
    if dim <= target:
        return dim
    t = (target // align) * align
    while t >= align:
        if dim % t == 0:
            return t
        t -= align
    return dim


def _head_group(num_heads, head_size):
    """Smallest head-group G (dividing num_heads) with lane width G*head_size a
    multiple of 128; falls back to all heads (block width == full merged width)."""
    for g in range(1, num_heads + 1):
        if num_heads % g == 0 and (g * head_size) % 128 == 0:
            return g
    return num_heads


def _vmem_limit(est_bytes):
    # Cap well below v7x's 64 MiB physical VMEM; keep >= v5e's 16 MiB default.
    return int(min(48 * 1024 * 1024, max(est_bytes + 4 * 1024 * 1024,
                                         16 * 1024 * 1024)))


# ------------------------------------------------------------------
# Kernel 1: tiled linear projection  y = x @ W_t + b
#   x   : [M, Din]       (M = B*T tokens, flattened), compute dtype
#   w_t : [Din, Dout]    (pre-transposed, scale pre-folded for W_Q), compute dtype
#   b   : [1, Dout]      f32
# Grid (M//tm, Dout//tn, Din//tk), f32 VMEM accumulator, init/finalize via pl.when.
# n_split=2 writes the output as [2, M, Dout//2] (K plane / V plane) directly.
# ------------------------------------------------------------------
def _linear_kernel(x_ref, wt_ref, b_ref, o_ref, acc_ref):
    @pl.when(pl.program_id(2) == 0)
    def _():
        acc_ref[...] = jnp.zeros_like(acc_ref)

    acc_ref[...] += jnp.dot(x_ref[...], wt_ref[...],
                            preferred_element_type=jnp.float32)

    @pl.when(pl.program_id(2) == pl.num_programs(2) - 1)
    def _():
        o_ref[...] = (acc_ref[...] + b_ref[...]).astype(o_ref.dtype).reshape(o_ref.shape)


def pallas_linear(x, w_t, b_row, out_dtype, n_split=1):
    M, Din = x.shape
    Dout = w_t.shape[1]
    assert Dout % n_split == 0
    d_sub = Dout // n_split
    if n_split > 1:
        assert d_sub % 128 == 0, "split output requires 128-aligned per-plane width"

    tm = _pick_tile(M, 512, _sublane_align(x.dtype))
    tn = _pick_tile(d_sub, 512, 128)
    tk = _pick_tile(Din, 512, 128)
    nD = d_sub // tn
    grid = (M // tm, Dout // tn, Din // tk)

    if n_split == 1:
        out_shape = jax.ShapeDtypeStruct((M, Dout), out_dtype)
        out_spec = pl.BlockSpec((tm, tn), lambda i, j, k: (i, j))
    else:
        out_shape = jax.ShapeDtypeStruct((n_split, M, d_sub), out_dtype)
        out_spec = pl.BlockSpec((1, tm, tn), lambda i, j, k: (j // nD, i, j % nD))

    itm = jnp.dtype(x.dtype).itemsize
    est = (2 * (tm * tk * itm + tk * tn * itm
                + tm * tn * jnp.dtype(out_dtype).itemsize + tn * 4)
           + tm * tn * 4)

    return pl.pallas_call(
        _linear_kernel,
        out_shape=out_shape,
        grid_spec=pltpu.PrefetchScalarGridSpec(
            num_scalar_prefetch=0,
            grid=grid,
            in_specs=[
                pl.BlockSpec((tm, tk), lambda i, j, k: (i, k)),
                pl.BlockSpec((tk, tn), lambda i, j, k: (k, j)),
                pl.BlockSpec((1, tn), lambda i, j, k: (0, j)),
            ],
            out_specs=out_spec,
            scratch_shapes=[pltpu.VMEM((tm, tn), jnp.float32)],
        ),
        compiler_params=pltpu.CompilerParams(
            dimension_semantics=("parallel", "parallel", "arbitrary"),
            vmem_limit_bytes=_vmem_limit(est)),
    )(x, w_t, b_row)


# ------------------------------------------------------------------
# Kernel 2: flash-style multi-head attention (online softmax)
#   q_ref  : [1, tq, GD]         merged head-group, lane-dense (GD = G*head_size)
#   k_ref  : [1, 1, tk, GD]      plane 0 of the fused KV projection
#   v_ref  : [1, 1, tk, GD]      plane 1 of the fused KV projection
#   qk_ref : [1, tq, 1] int32    per-query validity
#   kk_ref : [1, 1, tk] int32    per-key validity
#   o_ref  : [1, tq, GD]
# Grid (B, head_groups, Tq//tq, Tk//tk); kv axis last ("arbitrary").
# Scratch (persist across kv steps): m_sc / l_sc / acc_sc all [tq, GD] f32
# (m/l lane-replicated per head -> slab stores + fully dense finalize).
# ------------------------------------------------------------------
def _mha_flash_kernel(q_ref, k_ref, v_ref, qk_ref, kk_ref, o_ref,
                      m_sc, l_sc, acc_sc,
                      *, heads_per_block, head_size, approx_recip):
    G, hd = heads_per_block, head_size
    ki = pl.program_id(3)

    @pl.when(ki == 0)
    def _():
        m_sc[...] = jnp.full_like(m_sc, -jnp.inf)
        l_sc[...] = jnp.zeros_like(l_sc)
        acc_sc[...] = jnp.zeros_like(acc_sc)

    q = q_ref[0]            # [tq, GD]  compute dtype (scale already folded into W_Q)
    k = k_ref[0, 0]         # [tk, GD]
    v = v_ref[0, 0]         # [tk, GD]
    tq, tk = q.shape[0], k.shape[0]

    # keep[i, j] = (query i valid) AND (key j valid); built once per tile from
    # two O(T) vectors -- replaces the dense [tq, tk] mask DMA stream.
    keep = jnp.logical_and(
        jnp.broadcast_to(qk_ref[0], (tq, tk)) > 0,
        jnp.broadcast_to(kk_ref[0], (tq, tk)) > 0)
    neg = jnp.float32(-1000000000.0)

    # TODO(synk): scalar-prefetch a per-batch "valid key" extent and pl.when-skip
    # fully padded kv tiles (changes fully-masked-row semantics, so kept exact here).
    for h in range(G):                              # static unroll over the small group
        sl = slice(h * hd, (h + 1) * hd)
        s = lax.dot_general(q[:, sl], k[:, sl], (((1,), (1,)), ((), ())),
                            preferred_element_type=jnp.float32)       # [tq, tk]
        s = jnp.where(keep, s, neg)

        m_prev = m_sc[:, h * hd:h * hd + 1]          # [tq, 1]
        l_prev = l_sc[:, h * hd:h * hd + 1]
        m_new = jnp.maximum(m_prev, jnp.max(s, axis=-1, keepdims=True))
        alpha = jnp.exp(m_prev - m_new)
        p = jnp.exp(s - m_new)                       # [tq, tk] f32
        l_new = alpha * l_prev + jnp.sum(p, axis=-1, keepdims=True)

        pv = lax.dot_general(p.astype(v.dtype), v[:, sl], (((1,), (0,)), ((), ())),
                             preferred_element_type=jnp.float32)      # [tq, hd]
        acc_sc[:, sl] = alpha * acc_sc[:, sl] + pv
        # Lane-replicated running stats -> hd-wide slab stores (no 1-lane vst).
        m_sc[:, sl] = jnp.broadcast_to(m_new, (tq, hd))
        l_sc[:, sl] = jnp.broadcast_to(l_new, (tq, hd))

    @pl.when(ki == pl.num_programs(3) - 1)
    def _():
        # One full-width reciprocal (EUP) + one multiply + one dense lane-wide store.
        inv = pl.reciprocal(l_sc[...], approx=approx_recip)
        o_ref[0] = (acc_sc[...] * inv).astype(o_ref.dtype)


def pallas_attention(q, kv, q_keep, k_keep, num_heads, head_size, out_dtype,
                     approx_recip=True):
    # q: [B, Tq, Dd]; kv: [2, B, Tk, Dd] (plane 0 = K, plane 1 = V)
    # q_keep: [B, Tq, 1] int32 ; k_keep: [B, 1, Tk] int32
    B, Tq, Dd = q.shape
    Tk = kv.shape[2]
    G = _head_group(num_heads, head_size)
    GD = G * head_size
    NG = num_heads // G

    tq = _pick_tile(Tq, 512, _sublane_align(q.dtype))
    tk = _pick_tile(Tk, 512, 128)

    qb = jnp.dtype(q.dtype).itemsize
    ob = jnp.dtype(out_dtype).itemsize

    def est(tq_, tk_):
        return (2 * (tq_ * GD * qb + 2 * tk_ * GD * qb + tq_ * GD * ob
                     + tq_ * 4 + tk_ * 4)
                + 3 * tq_ * GD * 4)

    budget = 40 * 1024 * 1024
    while est(tq, tk) > budget and tq % 16 == 0 and tq > 16:
        tq //= 2
    while est(tq, tk) > budget and tk % 256 == 0 and tk > 256:
        tk //= 2

    grid = (B, NG, Tq // tq, Tk // tk)
    kernel = functools.partial(_mha_flash_kernel, heads_per_block=G,
                               head_size=head_size, approx_recip=approx_recip)
    return pl.pallas_call(
        kernel,
        out_shape=jax.ShapeDtypeStruct((B, Tq, Dd), out_dtype),
        grid_spec=pltpu.PrefetchScalarGridSpec(
            num_scalar_prefetch=0,
            grid=grid,
            in_specs=[
                pl.BlockSpec((1, tq, GD), lambda b, g, qi, ki: (b, qi, g)),
                pl.BlockSpec((1, 1, tk, GD), lambda b, g, qi, ki: (0, b, ki, g)),
                pl.BlockSpec((1, 1, tk, GD), lambda b, g, qi, ki: (1, b, ki, g)),
                pl.BlockSpec((1, tq, 1), lambda b, g, qi, ki: (b, qi, 0)),
                pl.BlockSpec((1, 1, tk), lambda b, g, qi, ki: (b, 0, ki)),
            ],
            out_specs=pl.BlockSpec((1, tq, GD), lambda b, g, qi, ki: (b, qi, g)),
            scratch_shapes=[
                pltpu.VMEM((tq, GD), jnp.float32),   # running max  m (lane-replicated)
                pltpu.VMEM((tq, GD), jnp.float32),   # running sum  l (lane-replicated)
                pltpu.VMEM((tq, GD), jnp.float32),   # unnormalized context
            ],
        ),
        compiler_params=pltpu.CompilerParams(
            dimension_semantics=("parallel", "parallel", "parallel", "arbitrary"),
            vmem_limit_bytes=_vmem_limit(est(tq, tk))),
    )(q, kv, kv, q_keep, k_keep)


# ------------------------------------------------------------------
# Module wrapper (mirrors MultiHeadAttention.forward)
# ------------------------------------------------------------------
class MultiHeadAttentionPallas:
    def __init__(self, encode_hidden_size, decode_hidden_size,
                 num_attention_heads, attention_head_size, key,
                 compute_dtype=jnp.bfloat16, approx_softmax_recip=True):
        self.H = num_attention_heads
        self.hd = attention_head_size
        self.Dd = decode_hidden_size
        self.compute_dtype = compute_dtype
        self.approx = approx_softmax_recip
        De2 = 2 * encode_hidden_size

        def init_linear(k, fan_out, fan_in):
            kw, kb = jax.random.split(k)
            bound = 1.0 / math.sqrt(fan_in)
            w = jax.random.uniform(kw, (fan_out, fan_in), jnp.float32, -bound, bound)
            b = jax.random.uniform(kb, (fan_out,), jnp.float32, -bound, bound)
            return w, b

        kq, kk, kv = jax.random.split(key, 3)
        # f32 master copies (also used by the pure-JAX reference).
        self.Wq, self.bq = init_linear(kq, decode_hidden_size, decode_hidden_size)
        self.Wk, self.bk = init_linear(kk, decode_hidden_size, De2)
        self.Wv, self.bv = init_linear(kv, decode_hidden_size, De2)

        # 1/sqrt(head_size) folded into W_Q / b_Q -> no per-score scale multiply.
        scale = 1.0 / math.sqrt(attention_head_size)
        self.Wq_t = (self.Wq * scale).T.astype(compute_dtype)            # [Dd, Dd]
        self.bq_row = (self.bq * scale).reshape(1, -1).astype(jnp.float32)
        # Fused K/V projection weight: output lanes = [K | V].
        self.Wkv_t = jnp.concatenate([self.Wk, self.Wv], axis=0).T.astype(
            compute_dtype)                                               # [De2, 2*Dd]
        self.bkv_row = jnp.concatenate([self.bk, self.bv]).reshape(1, -1).astype(
            jnp.float32)

    def _project_kv(self, x_e, B, Tk):
        Dd, cd = self.Dd, self.compute_dtype
        if Dd % 128 == 0:
            # Fused projection writes K plane / V plane directly: [2, B*Tk, Dd].
            kv3 = pallas_linear(x_e, self.Wkv_t, self.bkv_row, cd, n_split=2)
            return kv3.reshape(2, B, Tk, Dd)
        # Small / lane-unaligned Dd: plain fused projection, split + stack outside.
        # TODO(synk): this fallback pays one extra split/stack pass (only Dd % 128 != 0).
        kv = pallas_linear(x_e, self.Wkv_t, self.bkv_row, cd).reshape(B, Tk, 2 * Dd)
        return jnp.stack([kv[..., :Dd], kv[..., Dd:]], axis=0)

    def __call__(self, decode_hidden_states, encode_outputs, attention_mask=None,
                 *, targets=None, inputs=None):
        B, Tq, Dd = decode_hidden_states.shape
        Tk = encode_outputs.shape[1]
        cd = self.compute_dtype
        out_dtype = decode_hidden_states.dtype

        # Per-token validity vectors (O(T)) instead of the dense [B,Tq,Tk] mask stream.
        if targets is not None and inputs is not None:
            q_keep = targets > 0
            k_keep = inputs > 0
        else:
            # Exact factorization for masks built by `mask()` (rank-1 outer products).
            # TODO(synk): arbitrary non-outer-product masks would need a dense mask path.
            m = attention_mask > 0
            q_keep = jnp.any(m, axis=2)
            k_keep = jnp.any(m, axis=1)
        q_keep = q_keep.astype(jnp.int32)[:, :, None]      # [B, Tq, 1]
        k_keep = k_keep.astype(jnp.int32)[:, None, :]      # [B, 1, Tk]

        x_q = decode_hidden_states.reshape(B * Tq, Dd).astype(cd)
        x_e = encode_outputs.reshape(B * Tk, -1).astype(cd)

        q = pallas_linear(x_q, self.Wq_t, self.bq_row, out_dtype=cd).reshape(B, Tq, Dd)
        kv = self._project_kv(x_e, B, Tk)                  # [2, B, Tk, Dd]

        return pallas_attention(q, kv, q_keep, k_keep, self.H, self.hd, out_dtype,
                                approx_recip=self.approx)


def make_mask(targets, inputs):
    # JAX equivalent of the torch `mask` helper: [B,Tq,1] @ [B,1,Tk] -> [B,Tq,Tk]
    t = (targets > 0).astype(jnp.int32)[:, :, None]
    i = (inputs > 0).astype(jnp.int32)[:, None, :]
    return jnp.einsum('bqo,bok->bqk', t, i).astype(jnp.int32)


# ------------------------------------------------------------------
# Pure-JAX reference for validation (uses the f32 master weights)
# ------------------------------------------------------------------
def reference_forward(mod, dh, eo, attn_mask):
    B, Tq, Dd = dh.shape
    Tk = eo.shape[1]
    q = dh @ mod.Wq.T + mod.bq
    k = eo @ mod.Wk.T + mod.bk
    v = eo @ mod.Wv.T + mod.bv
    q = q.reshape(B, Tq, mod.H, mod.hd).transpose(0, 2, 1, 3)
    k = k.reshape(B, Tk, mod.H, mod.hd).transpose(0, 2, 1, 3)
    v = v.reshape(B, Tk, mod.H, mod.hd).transpose(0, 2, 1, 3)
    scores = jnp.einsum('bhqd,bhkd->bhqk', q, k) / math.sqrt(mod.hd)
    keep = (attn_mask > 0)[:, None, :, :]
    scores = jnp.where(keep, scores, -1000000000.0)
    probs = jax.nn.softmax(scores, axis=-1)
    ctx = jnp.einsum('bhqk,bhkd->bhqd', probs, v)
    return ctx.transpose(0, 2, 1, 3).reshape(B, Tq, Dd)


def _run_case(B, Tq, Tk, encode_hidden_size, decode_hidden_size, num_heads,
              head_size, seed):
    root = jax.random.PRNGKey(seed)
    k_param, k_dh, k_eo, k_t, k_i = jax.random.split(root, 5)

    dh = jax.random.normal(k_dh, (B, Tq, decode_hidden_size), jnp.float32)
    eo = jax.random.normal(k_eo, (B, Tk, 2 * encode_hidden_size), jnp.float32)
    targets = jax.random.randint(k_t, (B, Tq), 0, 5)
    inputs = jax.random.randint(k_i, (B, Tk), 0, 5)
    attention_mask = make_mask(targets, inputs)            # [B, Tq, Tk] int32

    # --- exact path: f32 matmul operands, exact softmax reciprocal -----------
    mod_f32 = MultiHeadAttentionPallas(
        encode_hidden_size, decode_hidden_size, num_heads, head_size, k_param,
        compute_dtype=jnp.float32, approx_softmax_recip=False)
    out = jax.block_until_ready(mod_f32(dh, eo, attention_mask))
    ref = reference_forward(mod_f32, dh, eo, attention_mask)
    assert out.shape == (B, Tq, decode_hidden_size)
    assert jnp.allclose(out, ref, atol=2e-3, rtol=2e-3), "f32 mismatch vs reference"

    # Fast path: per-token vectors, no mask materialization anywhere.
    out_vec = jax.block_until_ready(mod_f32(dh, eo, targets=targets, inputs=inputs))
    assert jnp.allclose(out_vec, out, atol=1e-6, rtol=1e-6), "vector-mask path mismatch"

    # --- perf path: bf16 MXU operands, approx reciprocal ---------------------
    mod_bf16 = MultiHeadAttentionPallas(
        encode_hidden_size, decode_hidden_size, num_heads, head_size, k_param,
        compute_dtype=jnp.bfloat16, approx_softmax_recip=True)
    out_bf = jax.block_until_ready(mod_bf16(dh, eo, attention_mask))
    assert out_bf.shape == (B, Tq, decode_hidden_size)
    assert jnp.allclose(out_bf.astype(jnp.float32), ref,
                        atol=5e-2, rtol=5e-2), "bf16 mismatch vs reference"


if __name__ == "__main__":
    # Case 1: tiny shapes matching the module's spirit (exercises the
    # small-Dd fallback path: GD == Dd, unfused KV split).
    _run_case(B=2, Tq=8, Tk=8, encode_hidden_size=16, decode_hidden_size=32,
              num_heads=4, head_size=8, seed=0)

    # Case 2: 128-lane-aligned config (exercises the fused K/V plane projection
    # and the lane-dense head-group path: G=2, GD=128).
    _run_case(B=2, Tq=8, Tk=8, encode_hidden_size=64, decode_hidden_size=128,
              num_heads=2, head_size=64, seed=1)

    print("KERNEL_OK")
</pallas_src>

<mosaic_0001>
module attributes {stable_mosaic.version = 11 : i64} {
  func.func @_linear_kernel(%arg0: i32, %arg1: i32, %arg2: i32, %arg3: memref<16x32xf32, #tpu.memory_space<vmem>>, %arg4: memref<32x32xf32, #tpu.memory_space<vmem>>, %arg5: memref<1x32xf32, #tpu.memory_space<vmem>>, %arg6: memref<16x32xf32, #tpu.memory_space<vmem>>, %arg7: memref<16x32xf32, #tpu.memory_space<vmem>>) attributes {dimension_semantics = [#tpu.dimension_semantics<parallel>, #tpu.dimension_semantics<parallel>, #tpu.dimension_semantics<arbitrary>], iteration_bounds = array<i64: 1, 1, 1>, scalar_prefetch = 0 : i64, scratch_operands = 1 : i64, tpu.core_type = #tpu.core_type<tc>, window_params = [{transform_indices = @transform_0, window_bounds = array<i64: 16, 32>}, {transform_indices = @transform_1, window_bounds = array<i64: 32, 32>}, {transform_indices = @transform_2, window_bounds = array<i64: 1, 32>}, {transform_indices = @transform_3, window_bounds = array<i64: 16, 32>}]} {
    %c0_i32 = arith.constant 0 : i32
    %0 = arith.cmpi eq, %arg2, %c0_i32 : i32
    %1 = arith.extui %0 : i1 to i32
    %c0_i32_0 = arith.constant 0 : i32
    %2 = arith.cmpi ne, %1, %c0_i32_0 : i32
    scf.if %2 {
      %cst_10 = arith.constant 0.000000e+00 : f32
      %12 = vector.broadcast %cst_10 : f32 to vector<16x32xf32>
      %c0_11 = arith.constant 0 : index
      %c0_12 = arith.constant 0 : index
      %13 = vector.load %arg7[%c0_11, %c0_12] : memref<16x32xf32, #tpu.memory_space<vmem>>, vector<16x32xf32>
      tpu.vector_store %arg7[%c0_11, %c0_12], %12 {strides = array<i32>} : memref<16x32xf32, #tpu.memory_space<vmem>>, vector<16x32xf32>,
    } else {
    }
    %c0 = arith.constant 0 : index
    %c0_1 = arith.constant 0 : index
    %3 = vector.load %arg7[%c0, %c0_1] : memref<16x32xf32, #tpu.memory_space<vmem>>, vector<16x32xf32>
    %c0_2 = arith.constant 0 : index
    %c0_3 = arith.constant 0 : index
    %4 = vector.load %arg3[%c0_2, %c0_3] : memref<16x32xf32, #tpu.memory_space<vmem>>, vector<16x32xf32>
    %c0_4 = arith.constant 0 : index
    %c0_5 = arith.constant 0 : index
    %5 = vector.load %arg4[%c0_4, %c0_5] : memref<32x32xf32, #tpu.memory_space<vmem>>, vector<32x32xf32>
    %cst = arith.constant dense<0.000000e+00> : vector<16x32xf32>
    %6 = tpu.matmul %4, %5, %cst {dimension_numbers = #tpu.dot_dimension_numbers<[1], [0], [0], [1], [0, 0, 1, 1], [], []>} : vector<16x32xf32>, vector<32x32xf32>, vector<16x32xf32> -> vector<16x32xf32>
    %7 = arith.addf %3, %6 : vector<16x32xf32>
    %c0_6 = arith.constant 0 : index
    %c0_7 = arith.constant 0 : index
    %8 = vector.load %arg7[%c0_6, %c0_7] : memref<16x32xf32, #tpu.memory_space<vmem>>, vector<16x32xf32>
    tpu.vector_store %arg7[%c0_6, %c0_7], %7 {strides = array<i32>} : memref<16x32xf32, #tpu.memory_space<vmem>>, vector<16x32xf32>,
    %c0_i32_8 = arith.constant 0 : i32
    %9 = arith.cmpi eq, %arg2, %c0_i32_8 : i32
    %10 = arith.extui %9 : i1 to i32
    %c0_i32_9 = arith.constant 0 : i32
    %11 = arith.cmpi ne, %10, %c0_i32_9 : i32
    scf.if %11 {
      %c0_10 = arith.constant 0 : index
      %c0_11 = arith.constant 0 : index
      %12 = vector.load %arg7[%c0_10, %c0_11] : memref<16x32xf32, #tpu.memory_space<vmem>>, vector<16x32xf32>
      %c0_12 = arith.constant 0 : index
      %c0_13 = arith.constant 0 : index
      %13 = vector.load %arg5[%c0_12, %c0_13] : memref<1x32xf32, #tpu.memory_space<vmem>>, vector<1x32xf32>
      %14 = vector.broadcast %13 : vector<1x32xf32> to vector<16x32xf32>
      %15 = arith.addf %12, %14 : vector<16x32xf32>
      %c0_14 = arith.constant 0 : index
      %c0_15 = arith.constant 0 : index
      %16 = vector.load %arg6[%c0_14, %c0_15] : memref<16x32xf32, #tpu.memory_space<vmem>>, vector<16x32xf32>
      tpu.vector_store %arg6[%c0_14, %c0_15], %15 {strides = array<i32>} : memref<16x32xf32, #tpu.memory_space<vmem>>, vector<16x32xf32>,
    } else {
    }
    return
  }
  func.func @transform_0(%arg0: i32, %arg1: i32, %arg2: i32) -> (i32, i32) {
    %c0_i32 = arith.constant 0 : i32
    return %arg0, %arg2 : i32, i32
  }
  func.func @transform_1(%arg0: i32, %arg1: i32, %arg2: i32) -> (i32, i32) {
    %c0_i32 = arith.constant 0 : i32
    return %arg2, %arg1 : i32, i32
  }
  func.func @transform_2(%arg0: i32, %arg1: i32, %arg2: i32) -> (i32, i32) {
    %c0_i32 = arith.constant 0 : i32
    %c0_i32_0 = arith.constant 0 : i32
    return %c0_i32, %arg1 : i32, i32
  }
  func.func @transform_3(%arg0: i32, %arg1: i32, %arg2: i32) -> (i32, i32) {
    %c0_i32 = arith.constant 0 : i32
    return %arg0, %arg1 : i32, i32
  }
}

</mosaic_0001>

<llo_original>
// kernel: tpu_custom_call.1
$region0: #{tpu_custom_call.1}
  #allocation0 [shape = 'u32[]', space=smem, size = 0x4, offset = 0x4, fixed_abs, tag = 'smem constant byte address 0x4 - core index']
  #allocation1 [shape = 'u32[144,128]{1,0:T(1,128)}', space=vmem, size = 0x12000, scoped, tag = 'internal scratch']
  #allocation2 [shape = 'f32[16,32]{1,0:T(8,128)}', space=vmem, size = 0x2000, scoped, tag = 'scratch operand']
  %s0 = inlined_call_operand.hbm [shape: f32[16,32], index: 0, kind: input, shape index: {}]
  %s1 = inlined_call_operand.hbm [shape: f32[32,32], index: 1, kind: input, shape index: {}]
  %s2 = inlined_call_operand.vmem [shape: f32[1,32], index: 2, kind: input, shape index: {}]
  %s3 = inlined_call_operand.hbm [shape: f32[16,32], index: 3, kind: output, shape index: {}]
  %s4 = sld [smem:[#allocation0]]
  $region38: #{tpu_custom_call.1} parent=0
    _
  %s6 = ssub.s32 1, %s4
  %s7 = scalar_select 0, %s6, %s4
  $region1: #{tpu_custom_call.1} parent=0
    #allocation3 [shape = 'u8[8192]{0}', space=vmem, size = 0x2000, scoped, tag = 'input window, operand 0, single buffered']
    #allocation4 [shape = 's32[1]{0}', space=sflag, size = 0x4, scoped, tag = 'scoped memory for tpu_custom_call.1']
    #allocation5 [shape = 's32[1]{0}', space=sflag, size = 0x4, scoped, tag = 'scoped memory for tpu_custom_call.1']
    #allocation6 [shape = 'u8[16384]{0}', space=vmem, size = 0x4000, scoped, tag = 'input window, operand 1, single buffered']
    #allocation7 [shape = 's32[1]{0}', space=sflag, size = 0x4, scoped, tag = 'scoped memory for tpu_custom_call.1']
    #allocation8 [shape = 'u8[8192]{0}', space=vmem, size = 0x2000, scoped, tag = 'output window, operand 0, single buffered']
    %8 = vsyncpa [#allocation4], 0
    %9 = vsyncpa [#allocation7], 0
    %10 = vsyncpa [#allocation5], 0
    // Predicated region
    $region2: #{tpu_custom_call.1} parent=1 // pred_check
      _
    $region3: #{tpu_custom_call.1} parent=1 // pred_check_branch
      %12 = sbr.rel (0) target = $region5
    $region4: #{tpu_custom_call.1} parent=1 // pred_region
      %s14 = ssub.s32 256, 256
      %15 = vsyncadd [#allocation4], %s14
      %s16 = sshll.u32 [#allocation3], 4
      %s17 = int_to_ptr.vmem [resolvable:$true] %s16
      %22 = dma.hbm_to_vmem [thread:$0]  %s0, 256, %s17, [#allocation4], 128, 128, 8
    $region5: #{tpu_custom_call.1} parent=1 // pred_fallthru
      _
    // Predicated region
    $region6: #{tpu_custom_call.1} parent=1 // pred_check
      _
    $region7: #{tpu_custom_call.1} parent=1 // pred_check_branch
      %24 = sbr.rel (0) target = $region9
    $region8: #{tpu_custom_call.1} parent=1 // pred_region
      %s26 = ssub.s32 512, 512
      %27 = vsyncadd [#allocation7], %s26
      %s28 = sshll.u32 [#allocation6], 4
      %s29 = int_to_ptr.vmem [resolvable:$true] %s28
      %34 = dma.hbm_to_vmem [thread:$0]  %s1, 512, %s29, [#allocation7], 128, 128, 8
    $region9: #{tpu_custom_call.1} parent=1 // pred_fallthru
      _
    // Predicated region
    $region10: #{tpu_custom_call.1} parent=1 // pred_check
      _
    $region11: #{tpu_custom_call.1} parent=1 // pred_check_branch
      %36 = sbr.rel (0) target = $region13
    $region12: #{tpu_custom_call.1} parent=1 // pred_region
      _
    $region13: #{tpu_custom_call.1} parent=1 // pred_fallthru
      _
    // Predicated region
    $region14: #{tpu_custom_call.1} parent=1 // pred_check
      _
    $region15: #{tpu_custom_call.1} parent=1 // pred_check_branch
      %38 = sbr.rel (0) target = $region17
    $region16: #{tpu_custom_call.1} parent=1 // pred_region
      %39 = dma.done [#allocation4], 256
    $region17: #{tpu_custom_call.1} parent=1 // pred_fallthru
      _
    // Predicated region
    $region18: #{tpu_custom_call.1} parent=1 // pred_check
      _
    $region19: #{tpu_custom_call.1} parent=1 // pred_check_branch
      %41 = sbr.rel (0) target = $region21
    $region20: #{tpu_custom_call.1} parent=1 // pred_region
      %42 = dma.done [#allocation7], 512
    $region21: #{tpu_custom_call.1} parent=1 // pred_fallthru
      _
    %p43 = scmp.eq.s32.totalorder 0, 0
    // Predicated region
    $region22: #{tpu_custom_call.1} parent=1 // pred_check
      %p44 = pneg %p43
    $region23: #{tpu_custom_call.1} parent=1 // pred_check_branch
      %46 = sbr.rel (%p44) target = $region25
    $region24: #{tpu_custom_call.1} parent=1 // pred_region
      %vm47 = vcmask 261120
      %48 = vst.msk [vmem:[#allocation2] sm:$0xff] %vm47, 0.0
      %49 = vst.msk [vmem:[#allocation2 + $0x8] sm:$0xff] %vm47, 0.0
    $region25: #{tpu_custom_call.1} parent=1 // pred_fallthru
      _
    %v50 = vld [vmem:[#allocation2] sm:$0xff]
    %v51 = vld [vmem:[#allocation2 + $0x8] sm:$0xff]
    %v52 = vld [vmem:[#allocation3] sm:$0xff]
    %v53 = vld [vmem:[#allocation3 + $0x8] sm:$0xff]
    %v54 = vld [vmem:[#allocation6] sm:$0xff]
    %v55 = vld [vmem:[#allocation6 + $0x8] sm:$0xff]
    %v56 = vld [vmem:[#allocation6 + $0x10] sm:$0xff]
    %v57 = vld [vmem:[#allocation6 + $0x18] sm:$0xff]
    %vm58 = vcmask 261120
    %v60 = vsel %vm58, %v52, 0
    %v63 = vsel %vm58, %v53, 0
    %65 = vmatprep.subr.mxu0 0.0
    %66 = vmatpush1.msra.mxu0 %v54
    %67 = vmatprep.subr.mxu0 0.0
    %68 = vmatpush1.msra.mxu0 %v55
    %69 = vmatprep.subr.mxu0 0.0
    %70 = vmatpush1.msra.mxu0 %v56
    %71 = vmatprep.subr.mxu0 0.0
    %72 = vmatpush1.msra.mxu0 %v57
    %73 = vmatprep.subr.mxu0 0.0
    %74 = vmatpush1.msra.mxu0 0.0
    %75 = vmatprep.subr.mxu0 0.0
    %76 = vmatpush1.msra.mxu0 0.0
    %77 = vmatprep.subr.mxu0 0.0
    %78 = vmatpush1.msra.mxu0 0.0
    %79 = vmatprep.subr.mxu0 0.0
    %80 = vmatpush1.msra.mxu0 0.0
    %81 = vmatprep.subr.mxu0 0.0
    %82 = vmatpush1.msra.mxu0 0.0
    %83 = vmatprep.subr.mxu0 0.0
    %84 = vmatpush1.msra.mxu0 0.0
    %85 = vmatprep.subr.mxu0 0.0
    %86 = vmatpush1.msra.mxu0 0.0
    %87 = vmatprep.subr.mxu0 0.0
    %88 = vmatpush1.msra.mxu0 0.0
    %89 = vmatprep.subr.mxu0 0.0
    %90 = vmatpush1.msra.mxu0 0.0
    %91 = vmatprep.subr.mxu0 0.0
    %92 = vmatpush1.msra.mxu0 0.0
    %93 = vmatprep.subr.mxu0 0.0
    %94 = vmatpush1.msra.mxu0 0.0
    %95 = vmatprep.subr.mxu0 0.0
    %96 = vmatpush1.msra.mxu0 0.0
    %97 = vmatprep.subr.mxu0 0.0
    %98 = vmatpush1.msra.mxu0 0.0
    %99 = vmatprep.subr.mxu0 0.0
    %100 = vmatpush1.msra.mxu0 0.0
    %101 = vmatprep.subr.mxu0 0.0
    %102 = vmatpush1.msra.mxu0 0.0
    %103 = vmatprep.subr.mxu0 0.0
    %104 = vmatpush1.msra.mxu0 0.0
    %105 = vmatprep.subr.mxu0 0.0
    %106 = vmatpush1.msra.mxu0 0.0
    %107 = vmatprep.subr.mxu0 0.0
    %108 = vmatpush1.msra.mxu0 0.0
    %109 = vmatprep.subr.mxu0 0.0
    %110 = vmatpush1.msra.mxu0 0.0
    %111 = vmatprep.subr.mxu0 0.0
    %112 = vmatpush1.msra.mxu0 0.0
    %113 = vmatprep.subr.mxu0 0.0
    %114 = vmatpush1.msra.mxu0 0.0
    %115 = vmatprep.subr.mxu0 0.0
    %116 = vmatpush1.msra.mxu0 0.0
    %117 = vmatprep.subr.mxu0 0.0
    %118 = vmatpush1.msra.mxu0 0.0
    %119 = vmatprep.subr.mxu0 0.0
    %120 = vmatpush1.msra.mxu0 0.0
    %121 = vmatprep.subr.mxu0 0.0
    %122 = vmatpush1.msra.mxu0 0.0
    %123 = vmatprep.subr.mxu0 0.0
    %124 = vmatpush1.msra.mxu0 0.0
    %125 = vmatprep.subr.mxu0 0.0
    %126 = vmatpush1.msra.mxu0 0.0
    %127 = vmatprep.subr.mxu0 0.0
    %128 = vmatpush1.msra.mxu0 0.0
    %129 = vmatprep.mubr.f32.mxu0 0.0
    %130 = vmatmul.mubr.f32.gmra.mrb[0].mxu0 %v60
    %v131 = vpop.f32.mrb[0].mxu0
    %v132 = vadd.f32 0.0, %v131
    %v133 = vpop.f32.mrb[0].mxu0
    %134 = vmatprep.mubr.f32.mxu0 0.0
    %135 = vmatmul.mubr.f32.gmra.mrb[0].mxu0 %v63
    %v136 = vpop.f32.mrb[0].mxu0
    %v137 = vadd.f32 0.0, %v136
    %v138 = vpop.f32.mrb[0].mxu0
    %139 = vdwg.mxu0
    %v140 = vadd.f32 %v50, %v132
    %v141 = vadd.f32 %v51, %v137
    %142 = vst.msk [vmem:[#allocation2] sm:$0xff] %vm58, %v140
    %143 = vst.msk [vmem:[#allocation2 + $0x8] sm:$0xff] %vm58, %v141
    // Predicated region
    $region26: #{tpu_custom_call.1} parent=1 // pred_check
      %p144 = pneg %p43
    $region27: #{tpu_custom_call.1} parent=1 // pred_check_branch
      %146 = sbr.rel (%p144) target = $region29
    $region28: #{tpu_custom_call.1} parent=1 // pred_region
      %v147 = vld [vmem:[#allocation2] sm:$0xff]
      %v148 = vld [vmem:[#allocation2 + $0x8] sm:$0xff]
      %v149 = vld [vmem:[%s2] sm:$0x1]
      %v151 = vlaneseq
      %v152 = vshrl.u32 %v151, 7
      %v153 = vsub.s32 0, %v152
      %v154 = vrot.slane %v149, %v153
      %v156 = vadd.f32 %v147, %v154
      %v157 = vadd.f32 %v148, %v154
      %158 = vst.msk [vmem:[#allocation8] sm:$0xff] %vm58, %v156
      %159 = vst.msk [vmem:[#allocation8 + $0x8] sm:$0xff] %vm58, %v157
    $region29: #{tpu_custom_call.1} parent=1 // pred_fallthru
      _
    // Predicated region
    $region30: #{tpu_custom_call.1} parent=1 // pred_check
      _
    $region31: #{tpu_custom_call.1} parent=1 // pred_check_branch
      %161 = sbr.rel (0) target = $region33
    $region32: #{tpu_custom_call.1} parent=1 // pred_region
      %s163 = ssub.s32 256, 256
      %164 = vsyncadd [#allocation5], %s163
      %s165 = sshll.u32 [#allocation8], 4
      %s166 = int_to_ptr.vmem [resolvable:$true] %s165
      %171 = dma.vmem_to_hbm [thread:$0]  %s166, 256, %s3, [#allocation5], 128, 128, 8
    $region33: #{tpu_custom_call.1} parent=1 // pred_fallthru
      _
    // Predicated region
    $region34: #{tpu_custom_call.1} parent=1 // pred_check
      _
    $region35: #{tpu_custom_call.1} parent=1 // pred_check_branch
      %173 = sbr.rel (0) target = $region37
    $region36: #{tpu_custom_call.1} parent=1 // pred_region
      %174 = dma.done [#allocation5], 256
    $region37: #{tpu_custom_call.1} parent=1 // pred_fallthru
      _
    %175 = vsyncpa [#allocation4], 1
    %176 = vsyncpa [#allocation7], 1
    %177 = vsyncpa [#allocation5], 1

</llo_original>
